<compile_context>
chip_gen: v7x
topology: tpu7x:2x2x1
jax: 0.10.0
libtpu: 0.0.40
codegen_flags: <defaults>
</compile_context>

<pallas_src>
import jax
import jax.numpy as jnp
from jax.experimental import pallas as pl
from jax.experimental.pallas import tpu as pltpu


def _make_kernel(S, ts, has_s_tail):
    def mean_pool_kernel(h_ref, m_ref, d_ref, o_ref):
        # h_ref : (tb, ts, th)  hidden tile, native dtype
        # m_ref : (tb, ts, 1)   mask tile, float32
        # d_ref : (tb, 1, 1)    clamped mask-sum (denominator), float32
        # o_ref : (tb, 1, th)   float32 output block == running accumulator over S
        k = pl.program_id(2)

        @pl.when(k == 0)
        def _init():
            o_ref[...] = jnp.zeros_like(o_ref)

        prod = h_ref[...].astype(jnp.float32) * m_ref[...]
        if has_s_tail:
            # Zero the ragged S tail of the *product*: out-of-bounds hidden/mask data
            # is garbage (possibly NaN/Inf), and 0 * NaN would poison the accumulator.
            s_idx = k * ts + jax.lax.broadcasted_iota(jnp.int32, (1, ts, 1), 1)
            prod = jnp.where(s_idx < S, prod, 0.0)

        o_ref[...] += jnp.sum(prod, axis=1, keepdims=True)

        @pl.when(k == pl.num_programs(2) - 1)
        def _finalize():
            o_ref[...] = o_ref[...] / d_ref[...]

    return mean_pool_kernel


def _choose_tiles(B, S, H, itemsize, target_tile_bytes):
    """Byte-budgeted tiles: grow the contiguous H axis first, then S; tb = min(B, 8)."""

    def pick(tb):
        elems = max(1, target_tile_bytes // (tb * itemsize))  # ts*th element budget
        if H % 128 != 0:
            th = H                                   # full-extent block (no H padding)
        else:
            min_ts = max(1, min(S, 8))
            th_cap = max(128, ((elems // min_ts) // 128) * 128)
            th = min(H, th_cap)
        ts_cap = max(8, elems // th)
        ts = S if S <= ts_cap else max(8, (ts_cap // 8) * 8)
        return ts, th

    tb = min(B, 8)
    ts, th = pick(tb)
    grid = (pl.cdiv(B, tb), pl.cdiv(H, th), pl.cdiv(S, ts))

    # Keep both v7x TensorCores busy when the parallel axes would otherwise be degenerate.
    if grid[0] == 1 and grid[1] == 1 and B >= 2:
        tb = (B + 1) // 2
        ts, th = pick(tb)
        grid = (pl.cdiv(B, tb), pl.cdiv(H, th), pl.cdiv(S, ts))

    return tb, ts, th, grid


def mean_pooling(last_hidden_state, attention_mask, *, target_tile_bytes=12 * 1024 * 1024):
    B, S, H = last_hidden_state.shape
    itemsize = jnp.dtype(last_hidden_state.dtype).itemsize

    # Tiny wrapper-side preprocessing (negligible HBM traffic vs. the (B,S,H) hidden):
    #   mask as (B, S, 1) f32 for the in-kernel multiply, and the clamped denominator
    #   summed in f32 from the *original* mask (exact even for non-binary masks).
    mask_f32 = attention_mask.astype(jnp.float32).reshape(B, S, 1)
    denom = jnp.maximum(jnp.sum(attention_mask.astype(jnp.float32), axis=1), 1e-9)
    denom = denom.reshape(B, 1, 1)

    tb, ts, th, grid = _choose_tiles(B, S, H, itemsize, target_tile_bytes)
    has_s_tail = (S % ts) != 0

    # VMEM budget: double-buffered inputs/outputs + margin for compiler scratch.
    hid_tile = tb * ts * th * itemsize
    msk_tile = tb * ts * 4
    out_tile = tb * th * 4
    den_tile = tb * 4
    needed = 2 * (hid_tile + msk_tile + out_tile + den_tile) + 4 * 1024 * 1024
    vmem_limit = max(needed, 48 * 1024 * 1024)

    cost = pl.CostEstimate(
        flops=2 * B * S * H,
        transcendentals=0,
        bytes_accessed=B * S * H * itemsize + B * S * 4 + B * 4 + B * H * 4,
    )

    out3 = pl.pallas_call(
        _make_kernel(S, ts, has_s_tail),
        out_shape=jax.ShapeDtypeStruct((B, 1, H), jnp.float32),
        grid_spec=pltpu.PrefetchScalarGridSpec(
            num_scalar_prefetch=0,
            grid=grid,
            in_specs=[
                pl.BlockSpec((tb, ts, th), lambda i, j, k: (i, k, j)),  # hidden
                pl.BlockSpec((tb, ts, 1), lambda i, j, k: (i, k, 0)),   # mask (f32)
                pl.BlockSpec((tb, 1, 1), lambda i, j, k: (i, 0, 0)),    # denominator
            ],
            out_specs=pl.BlockSpec((tb, 1, th), lambda i, j, k: (i, 0, j)),
        ),
        compiler_params=pltpu.CompilerParams(
            dimension_semantics=("parallel", "parallel", "arbitrary"),
            vmem_limit_bytes=int(vmem_limit),
        ),
        cost_estimate=cost,
    )(last_hidden_state, mask_f32, denom)

    return out3[:, 0, :]


if __name__ == "__main__":
    key = jax.random.PRNGKey(0)
    k1, k2, k3, k4 = jax.random.split(key, 4)

    # Canonical small test: B=2, S=8, H=32, float32.
    B, S, H = 2, 8, 32
    hidden = jax.random.normal(k1, (B, S, H), dtype=jnp.float32)
    mask = (jax.random.uniform(k2, (B, S)) > 0.3).astype(jnp.int32)
    mask = mask.at[:, 0].set(1)  # at least one valid token per row

    out = jax.block_until_ready(mean_pooling(hidden, mask))

    m = mask[:, :, None].astype(jnp.float32)
    ref = jnp.sum(hidden * m, axis=1) / jnp.maximum(jnp.sum(m, axis=1), 1e-9)
    assert out.shape == (B, H) and out.dtype == jnp.float32
    assert jnp.allclose(out, ref, atol=1e-5, rtol=1e-5), float(jnp.max(jnp.abs(out - ref)))

    # Ragged shapes + bf16: exercises the cdiv grid (S tail via iota masking, partial
    # B tail block) by forcing tiny tiles through the byte budget.
    B2, S2, H2 = 9, 37, 32
    hidden2 = jax.random.normal(k3, (B2, S2, H2), dtype=jnp.bfloat16)
    mask2 = (jax.random.uniform(k4, (B2, S2)) > 0.4).astype(jnp.int32)
    mask2 = mask2.at[:, 0].set(1)

    out2 = jax.block_until_ready(mean_pooling(hidden2, mask2, target_tile_bytes=4096))

    m2 = mask2[:, :, None].astype(jnp.float32)
    h2 = hidden2.astype(jnp.float32)
    ref2 = jnp.sum(h2 * m2, axis=1) / jnp.maximum(jnp.sum(m2, axis=1), 1e-9)
    assert out2.shape == (B2, H2) and out2.dtype == jnp.float32
    assert jnp.allclose(out2, ref2, atol=1e-5, rtol=1e-5), float(jnp.max(jnp.abs(out2 - ref2)))

    print("KERNEL_OK")
</pallas_src>

<mosaic_0001>
module attributes {stable_mosaic.version = 11 : i64} {
  func.func @mean_pool_kernel(%arg0: i32, %arg1: i32, %arg2: i32, %arg3: memref<1x8x32xf32, #tpu.memory_space<vmem>>, %arg4: memref<1x8x1xf32, #tpu.memory_space<vmem>>, %arg5: memref<1x1x1xf32, #tpu.memory_space<vmem>>, %arg6: memref<1x1x32xf32, #tpu.memory_space<vmem>>) attributes {dimension_semantics = [#tpu.dimension_semantics<parallel>, #tpu.dimension_semantics<parallel>, #tpu.dimension_semantics<arbitrary>], iteration_bounds = array<i64: 2, 1, 1>, scalar_prefetch = 0 : i64, scratch_operands = 0 : i64, tpu.core_type = #tpu.core_type<tc>, window_params = [{transform_indices = @transform_0, window_bounds = array<i64: 1, 8, 32>}, {transform_indices = @transform_1, window_bounds = array<i64: 1, 8, 1>}, {transform_indices = @transform_2, window_bounds = array<i64: 1, 1, 1>}, {transform_indices = @transform_3, window_bounds = array<i64: 1, 1, 32>}]} {
    %c0_i32 = arith.constant 0 : i32
    %0 = arith.cmpi eq, %arg2, %c0_i32 : i32
    %1 = arith.extui %0 : i1 to i32
    %c0_i32_0 = arith.constant 0 : i32
    %2 = arith.cmpi ne, %1, %c0_i32_0 : i32
    scf.if %2 {
      %cst_14 = arith.constant 0.000000e+00 : f32
      %15 = vector.broadcast %cst_14 : f32 to vector<1x1x32xf32>
      %c0_15 = arith.constant 0 : index
      %c0_16 = arith.constant 0 : index
      %c0_17 = arith.constant 0 : index
      %16 = vector.load %arg6[%c0_15, %c0_16, %c0_17] : memref<1x1x32xf32, #tpu.memory_space<vmem>>, vector<1x1x32xf32>
      tpu.vector_store %arg6[%c0_15, %c0_16, %c0_17], %15 {strides = array<i32>} : memref<1x1x32xf32, #tpu.memory_space<vmem>>, vector<1x1x32xf32>,
    } else {
    }
    %c0 = arith.constant 0 : index
    %c0_1 = arith.constant 0 : index
    %c0_2 = arith.constant 0 : index
    %3 = vector.load %arg3[%c0, %c0_1, %c0_2] : memref<1x8x32xf32, #tpu.memory_space<vmem>>, vector<1x8x32xf32>
    %c0_3 = arith.constant 0 : index
    %c0_4 = arith.constant 0 : index
    %c0_5 = arith.constant 0 : index
    %4 = vector.load %arg4[%c0_3, %c0_4, %c0_5] : memref<1x8x1xf32, #tpu.memory_space<vmem>>, vector<1x8x1xf32>
    %5 = vector.broadcast %4 : vector<1x8x1xf32> to vector<1x8x32xf32>
    %6 = arith.mulf %3, %5 : vector<1x8x32xf32>
    %c0_6 = arith.constant 0 : index
    %c0_7 = arith.constant 0 : index
    %c0_8 = arith.constant 0 : index
    %7 = vector.load %arg6[%c0_6, %c0_7, %c0_8] : memref<1x1x32xf32, #tpu.memory_space<vmem>>, vector<1x1x32xf32>
    %cst = arith.constant dense<0.000000e+00> : vector<1x32xf32>
    %8 = vector.multi_reduction <add>, %6, %cst [1] : vector<1x8x32xf32> to vector<1x32xf32>
    %9 = vector.shape_cast %8 : vector<1x32xf32> to vector<1x1x32xf32>
    %10 = arith.addf %7, %9 : vector<1x1x32xf32>
    %c0_9 = arith.constant 0 : index
    %c0_10 = arith.constant 0 : index
    %c0_11 = arith.constant 0 : index
    %11 = vector.load %arg6[%c0_9, %c0_10, %c0_11] : memref<1x1x32xf32, #tpu.memory_space<vmem>>, vector<1x1x32xf32>
    tpu.vector_store %arg6[%c0_9, %c0_10, %c0_11], %10 {strides = array<i32>} : memref<1x1x32xf32, #tpu.memory_space<vmem>>, vector<1x1x32xf32>,
    %c0_i32_12 = arith.constant 0 : i32
    %12 = arith.cmpi eq, %arg2, %c0_i32_12 : i32
    %13 = arith.extui %12 : i1 to i32
    %c0_i32_13 = arith.constant 0 : i32
    %14 = arith.cmpi ne, %13, %c0_i32_13 : i32
    scf.if %14 {
      %c0_14 = arith.constant 0 : index
      %c0_15 = arith.constant 0 : index
      %c0_16 = arith.constant 0 : index
      %15 = vector.load %arg6[%c0_14, %c0_15, %c0_16] : memref<1x1x32xf32, #tpu.memory_space<vmem>>, vector<1x1x32xf32>
      %c0_17 = arith.constant 0 : index
      %c0_18 = arith.constant 0 : index
      %c0_19 = arith.constant 0 : index
      %16 = vector.load %arg5[%c0_17, %c0_18, %c0_19] : memref<1x1x1xf32, #tpu.memory_space<vmem>>, vector<1x1x1xf32>
      %17 = vector.broadcast %16 : vector<1x1x1xf32> to vector<1x1x32xf32>
      %18 = arith.divf %15, %17 : vector<1x1x32xf32>
      %c0_20 = arith.constant 0 : index
      %c0_21 = arith.constant 0 : index
      %c0_22 = arith.constant 0 : index
      %19 = vector.load %arg6[%c0_20, %c0_21, %c0_22] : memref<1x1x32xf32, #tpu.memory_space<vmem>>, vector<1x1x32xf32>
      tpu.vector_store %arg6[%c0_20, %c0_21, %c0_22], %18 {strides = array<i32>} : memref<1x1x32xf32, #tpu.memory_space<vmem>>, vector<1x1x32xf32>,
    } else {
    }
    return
  }
  func.func @transform_0(%arg0: i32, %arg1: i32, %arg2: i32) -> (i32, i32, i32) {
    %c0_i32 = arith.constant 0 : i32
    return %arg0, %arg2, %arg1 : i32, i32, i32
  }
  func.func @transform_1(%arg0: i32, %arg1: i32, %arg2: i32) -> (i32, i32, i32) {
    %c0_i32 = arith.constant 0 : i32
    %c0_i32_0 = arith.constant 0 : i32
    return %arg0, %arg2, %c0_i32 : i32, i32, i32
  }
  func.func @transform_2(%arg0: i32, %arg1: i32, %arg2: i32) -> (i32, i32, i32) {
    %c0_i32 = arith.constant 0 : i32
    %c0_i32_0 = arith.constant 0 : i32
    %c0_i32_1 = arith.constant 0 : i32
    return %arg0, %c0_i32, %c0_i32_0 : i32, i32, i32
  }
  func.func @transform_3(%arg0: i32, %arg1: i32, %arg2: i32) -> (i32, i32, i32) {
    %c0_i32 = arith.constant 0 : i32
    %c0_i32_0 = arith.constant 0 : i32
    return %arg0, %c0_i32, %arg1 : i32, i32, i32
  }
}

</mosaic_0001>

<llo_original>
// kernel: tpu_custom_call.1
$region0: #{tpu_custom_call.1}
  #allocation0 [shape = 'u32[]', space=smem, size = 0x4, offset = 0x4, fixed_abs, tag = 'smem constant byte address 0x4 - core index']
  #allocation1 [shape = 'u32[144,128]{1,0:T(1,128)}', space=vmem, size = 0x12000, scoped, tag = 'internal scratch']
  %s0 = inlined_call_operand.vmem [shape: f32[2,8,32], index: 0, kind: input, shape index: {}]
  %s1 = inlined_call_operand.vmem [shape: f32[2,8,1], index: 1, kind: input, shape index: {}]
  %s2 = inlined_call_operand.vmem [shape: f32[2,1,1], index: 2, kind: input, shape index: {}]
  %s3 = inlined_call_operand.hbm [shape: f32[2,1,32], index: 3, kind: output, shape index: {}]
  %s4 = sld [smem:[#allocation0]]
  $region53: #{tpu_custom_call.1} parent=0
    _
  %s6 = ssub.s32 1, %s4
  %s7 = scalar_select 0, %s6, %s4
  $region1: #{tpu_custom_call.1} parent=0
    #allocation2 [shape = 'u8[1024]{0}', space=vmem, size = 0x400, scoped, tag = 'output window, operand 0']
    #allocation3 [shape = 's32[2]{0}', space=sflag, size = 0x8, scoped, tag = 'scoped memory for tpu_custom_call.1']
    %8 = vsyncpa [#allocation3], 0
    %s9 = scalar_lea.sflag [#allocation3], 1
    %10 = vsyncpa %s9, 0
    loop: start=0, step=1, limit=4
    $region2: #{tpu_custom_call.1} parent=1 // loop_pre_header
      _
    $region3: #{tpu_custom_call.1} parent=1 // loop_header
      %s12 = sphi 0, %s16
      %p13 = scmp.ge.s32.totalorder %s12, 4
      %s19 = sphi 0, %s38
      %s20 = sphi 0, %s34
      %s21 = sphi 0, %s30
      %s22 = sphi 0, %s19
      %s23 = sphi 0, %s20
      %s24 = sphi 0, %s21
      %s25 = sphi 0, %s22
      %s26 = sphi 0, %s23
      %s27 = sphi 0, %s24
      %s45 = sphi 0, %s47
      %s48 = sphi 0, %s45
      %s49 = sphi 0, %s48
      %s65 = sphi 0, %s49
      %s73 = sphi 0, %s75
      %s76 = sphi 0, %s73
      %s77 = sphi 0, %s76
      %s93 = sphi 0, %s77
      %s99 = sphi 0, %s101
      %s102 = sphi 0, %s99
      %s103 = sphi 0, %s102
      %s119 = sphi 0, %s103
      %s127 = sphi 0, %s129
      %s130 = sphi 0, %s127
      %s131 = sphi 0, %s130
      %s147 = sphi 0, %s131
    $region4: #{tpu_custom_call.1} parent=1 // loop_header_branch
      %15 = sbr.rel (%p13) target = $region8
    $region5: #{tpu_custom_call.1} parent=1 // loop_body
      %s17 = ssub.s32 %s12, 1
      %s18 = ssub.s32 %s12, 2
      %s28 = sadd.s32 1, %s21
      %p29 = scmp.ge.s32.totalorder %s28, 1
      %s30 = scalar_select %p29, 0, %s28
      %s31 = sadd.s32 1, %s20
      %s32 = scalar_select %p29, %s31, %s20
      %p33 = scmp.ge.s32.totalorder %s32, 1
      %s34 = scalar_select %p33, 0, %s32
      %s35 = sadd.s32 1, %s19
      %s36 = scalar_select %p33, %s35, %s19
      %p37 = scmp.ge.s32.totalorder %s36, 2
      %s38 = scalar_select %p37, 0, %s36
      %s39 = ssub.s32 %s19, %s38
      %s40 = ssub.s32 %s21, %s30
      %s41 = sor.u32 %s39, %s40
      %s42 = ssub.s32 %s20, %s34
      %s43 = sor.u32 %s41, %s42
      %p44 = scmp.eq.s32.totalorder %s43, 0
      %s46 = sadd.s32 %s45, 1
      %s47 = scalar_select %p44, %s45, %s46
      %p50 = pneg %p44
      %p51 = scmp.eq.s32.totalorder %s12, 1
      %p52 = por %p50, %p51
      %p53 = scmp.ne.s32.totalorder %s45, %s48
      %p54 = scmp.eq.s32.totalorder %s12, 0
      %p55 = por %p53, %p54
      %p56 = scmp.ne.s32.totalorder %s45, %s48
      %p57 = scmp.eq.s32.totalorder %s17, 1
      %p58 = por %p56, %p57
      %p59 = scmp.ne.s32.totalorder %s48, %s49
      %p60 = scmp.eq.s32.totalorder %s17, 0
      %p61 = por %p59, %p60
      %p62 = scmp.ne.s32.totalorder %s48, %s49
      %p63 = scmp.eq.s32.totalorder %s18, 1
      %p64 = por %p62, %p63
      %p66 = scmp.ne.s32.totalorder %s49, %s65
      %p67 = scmp.eq.s32.totalorder %s18, 0
      %p68 = por %p66, %p67
      %s69 = ssub.s32 %s19, %s38
      %s70 = ssub.s32 %s21, %s30
      %s71 = sor.u32 %s69, %s70
      %p72 = scmp.eq.s32.totalorder %s71, 0
      %s74 = sadd.s32 %s73, 1
      %s75 = scalar_select %p72, %s73, %s74
      %p78 = pneg %p72
      %p79 = scmp.eq.s32.totalorder %s12, 1
      %p80 = por %p78, %p79
      %p81 = scmp.ne.s32.totalorder %s73, %s76
      %p82 = scmp.eq.s32.totalorder %s12, 0
      %p83 = por %p81, %p82
      %p84 = scmp.ne.s32.totalorder %s73, %s76
      %p85 = scmp.eq.s32.totalorder %s17, 1
      %p86 = por %p84, %p85
      %p87 = scmp.ne.s32.totalorder %s76, %s77
      %p88 = scmp.eq.s32.totalorder %s17, 0
      %p89 = por %p87, %p88
      %p90 = scmp.ne.s32.totalorder %s76, %s77
      %p91 = scmp.eq.s32.totalorder %s18, 1
      %p92 = por %p90, %p91
      %p94 = scmp.ne.s32.totalorder %s77, %s93
      %p95 = scmp.eq.s32.totalorder %s18, 0
      %p96 = por %p94, %p95
      %s97 = ssub.s32 %s19, %s38
      %p98 = scmp.eq.s32.totalorder %s97, 0
      %s100 = sadd.s32 %s99, 1
      %s101 = scalar_select %p98, %s99, %s100
      %p104 = pneg %p98
      %p105 = scmp.eq.s32.totalorder %s12, 1
      %p106 = por %p104, %p105
      %p107 = scmp.ne.s32.totalorder %s99, %s102
      %p108 = scmp.eq.s32.totalorder %s12, 0
      %p109 = por %p107, %p108
      %p110 = scmp.ne.s32.totalorder %s99, %s102
      %p111 = scmp.eq.s32.totalorder %s17, 1
      %p112 = por %p110, %p111
      %p113 = scmp.ne.s32.totalorder %s102, %s103
      %p114 = scmp.eq.s32.totalorder %s17, 0
      %p115 = por %p113, %p114
      %p116 = scmp.ne.s32.totalorder %s102, %s103
      %p117 = scmp.eq.s32.totalorder %s18, 1
      %p118 = por %p116, %p117
      %p120 = scmp.ne.s32.totalorder %s103, %s119
      %p121 = scmp.eq.s32.totalorder %s18, 0
      %p122 = por %p120, %p121
      %s123 = ssub.s32 %s19, %s38
      %s124 = ssub.s32 %s20, %s34
      %s125 = sor.u32 %s123, %s124
      %p126 = scmp.eq.s32.totalorder %s125, 0
      %s128 = sadd.s32 %s127, 1
      %s129 = scalar_select %p126, %s127, %s128
      %p132 = pneg %p126
      %p133 = scmp.eq.s32.totalorder %s12, 1
      %p134 = por %p132, %p133
      %p135 = scmp.ne.s32.totalorder %s127, %s130
      %p136 = scmp.eq.s32.totalorder %s12, 0
      %p137 = por %p135, %p136
      %p138 = scmp.ne.s32.totalorder %s127, %s130
      %p139 = scmp.eq.s32.totalorder %s17, 1
      %p140 = por %p138, %p139
      %p141 = scmp.ne.s32.totalorder %s130, %s131
      %p142 = scmp.eq.s32.totalorder %s17, 0
      %p143 = por %p141, %p142
      %p144 = scmp.ne.s32.totalorder %s130, %s131
      %p145 = scmp.eq.s32.totalorder %s18, 1
      %p146 = por %p144, %p145
      %p148 = scmp.ne.s32.totalorder %s131, %s147
      %p149 = scmp.eq.s32.totalorder %s18, 0
      %p150 = por %p148, %p149
      %p151 = scmp.le.s32.totalorder 1, %s12
      %p152 = scmp.lt.s32.totalorder %s12, 3
      %p153 = pnand %p151, %p152
      %p154 = pneg %p153
      // Predicated region
      $region9: #{tpu_custom_call.1} parent=5 // pred_check
        _
      $region10: #{tpu_custom_call.1} parent=5 // pred_check_branch
        %156 = sbr.rel (%p153) target = $region12
      $region11: #{tpu_custom_call.1} parent=5 // pred_region
        %s157 = ssub.s32 %s12, 1
      $region12: #{tpu_custom_call.1} parent=5 // pred_fallthru
        _
      %p158 = scmp.lt.s32.totalorder %s12, 2
      // Predicated region
      $region13: #{tpu_custom_call.1} parent=5 // pred_check
        %p159 = pneg %p158
      $region14: #{tpu_custom_call.1} parent=5 // pred_check_branch
        %161 = sbr.rel (%p159) target = $region16
      $region15: #{tpu_custom_call.1} parent=5 // pred_region
        // Predicated region
        $region17: #{tpu_custom_call.1} parent=15 // pred_check
          %p162 = pneg %p55
        $region18: #{tpu_custom_call.1} parent=15 // pred_check_branch
          %164 = sbr.rel (%p162) target = $region20
        $region19: #{tpu_custom_call.1} parent=15 // pred_region
          %p165 = scmp.lt.s32.totalorder %s19, 1
          %s166 = scalar_select %p165, %s19, 1
          %p167 = scmp.lt.s32.totalorder %s21, 0
          %s168 = scalar_select %p167, %s21, 0
          %p169 = scmp.lt.s32.totalorder %s20, 0
          %s170 = scalar_select %p169, %s20, 0
          %s171 = sadd.s32 %s170, %s168
          %s172 = sadd.s32 %s171, %s166
          %s173 = smul.addr %s172, 8
          %s174 = scalar_lea.vmem %s0, %s173
        $region20: #{tpu_custom_call.1} parent=15 // pred_fallthru
          _
        // Predicated region
        $region21: #{tpu_custom_call.1} parent=15 // pred_check
          %p175 = pneg %p83
        $region22: #{tpu_custom_call.1} parent=15 // pred_check_branch
          %177 = sbr.rel (%p175) target = $region24
        $region23: #{tpu_custom_call.1} parent=15 // pred_region
          %p178 = scmp.lt.s32.totalorder %s19, 1
          %s179 = scalar_select %p178, %s19, 1
          %p180 = scmp.lt.s32.totalorder %s21, 0
          %s181 = scalar_select %p180, %s21, 0
          %s182 = sadd.s32 %s181, %s179
          %s183 = smul.addr %s182, 8
          %s184 = scalar_lea.vmem %s1, %s183
        $region24: #{tpu_custom_call.1} parent=15 // pred_fallthru
          _
        // Predicated region
        $region25: #{tpu_custom_call.1} parent=15 // pred_check
          %p185 = pneg %p109
        $region26: #{tpu_custom_call.1} parent=15 // pred_check_branch
          %187 = sbr.rel (%p185) target = $region28
        $region27: #{tpu_custom_call.1} parent=15 // pred_region
          %p188 = scmp.lt.s32.totalorder %s19, 1
          %s189 = scalar_select %p188, %s19, 1
          %s190 = scalar_lea.vmem %s2, %s189
        $region28: #{tpu_custom_call.1} parent=15 // pred_fallthru
          _
      $region16: #{tpu_custom_call.1} parent=5 // pred_fallthru
        _
      %p191 = scmp.le.s32.totalorder 1, %s12
      %p192 = scmp.lt.s32.totalorder %s12, 3
      %p193 = pnand %p191, %p192
      %p194 = pneg %p193
      // Predicated region
      $region29: #{tpu_custom_call.1} parent=5 // pred_check
        _
      $region30: #{tpu_custom_call.1} parent=5 // pred_check_branch
        %196 = sbr.rel (%p193) target = $region32
      $region31: #{tpu_custom_call.1} parent=5 // pred_region
        %s197 = ssub.s32 %s12, 1
        %p198 = scmp.lt.s32.totalorder %s22, 1
        %s199 = scalar_select %p198, %s22, 1
        %p200 = scmp.lt.s32.totalorder %s24, 0
        %s201 = scalar_select %p200, %s24, 0
        %p202 = scmp.lt.s32.totalorder %s23, 0
        %s203 = scalar_select %p202, %s23, 0
        %s204 = sadd.s32 %s203, %s201
        %s205 = sadd.s32 %s204, %s199
        %s206 = smul.addr %s205, 8
        %s207 = scalar_lea.vmem %s0, %s206
        %p208 = pneg %p61
        %p209 = pneg %p58
        %p210 = scmp.lt.s32.totalorder %s22, 1
        %s211 = scalar_select %p210, %s22, 1
        %p212 = scmp.lt.s32.totalorder %s24, 0
        %s213 = scalar_select %p212, %s24, 0
        %s214 = sadd.s32 %s213, %s211
        %s215 = smul.addr %s214, 8
        %s216 = scalar_lea.vmem %s1, %s215
        %p217 = pneg %p89
        %p218 = pneg %p86
        %p219 = scmp.lt.s32.totalorder %s22, 1
        %s220 = scalar_select %p219, %s22, 1
        %s221 = scalar_lea.vmem %s2, %s220
        %p222 = pneg %p115
        %p223 = pneg %p112
        %p224 = pneg %p143
        %p225 = pneg %p140
        %s226 = sand.u32 %s130, 1
        %s227 = scalar_lea.sflag [#allocation3], %s226
        %s228 = sand.u32 %s130, 1
        %s229 = scalar_lea.vmem [#allocation2], %s228
        %p230 = scmp.lt.s32.totalorder %s22, 1
        %s231 = scalar_select %p230, %s22, 1
        %p232 = scmp.lt.s32.totalorder %s24, 0
        %s233 = scalar_select %p232, %s24, 0
        %p234 = scmp.lt.s32.totalorder %s23, 0
        %s235 = scalar_select %p234, %s23, 0
        %s236 = sadd.s32 %s235, %s233
        %s237 = sadd.s32 %s236, %s231
        %s238 = smul.addr %s237, 8
        %s239 = scalar_lea.vmem %s0, %s238
        %p240 = scmp.lt.s32.totalorder %s22, 1
        %s241 = scalar_select %p240, %s22, 1
        %p242 = scmp.lt.s32.totalorder %s24, 0
        %s243 = scalar_select %p242, %s24, 0
        %s244 = sadd.s32 %s243, %s241
        %s245 = smul.addr %s244, 8
        %s246 = scalar_lea.vmem %s1, %s245
        %p247 = scmp.lt.s32.totalorder %s22, 1
        %s248 = scalar_select %p247, %s22, 1
        %s249 = scalar_lea.vmem %s2, %s248
        %p250 = scmp.eq.s32.totalorder %s24, 0
        // Predicated region
        $region33: #{tpu_custom_call.1} parent=31 // pred_check
          %p251 = pneg %p250
        $region34: #{tpu_custom_call.1} parent=31 // pred_check_branch
          %253 = sbr.rel (%p251) target = $region36
        $region35: #{tpu_custom_call.1} parent=31 // pred_region
          %vm254 = vcmask 253952
          %255 = vst.msk [vmem:[%s229] sm:$0x1] %vm254, 0.0
        $region36: #{tpu_custom_call.1} parent=31 // pred_fallthru
          _
        %v256 = vld [vmem:[%s239] sm:$0xff]
        %v257 = vld [vmem:[%s246] sm:$0xff]
        %259 = vset.pattern.permute.xlu0 0
        %260 = vperm.xlu0 %259, %v257
        %v261 = vpop.permute.xlu0 %260
        %v263 = vmul.f32 %v256, %v261
        %v264 = vld [vmem:[%s229] sm:$0x1]
        %vm265 = vcmask 261120
        %v266 = vsel %vm265, %v263, 0.0
        %v267 = vrot.slane %v266, 4
        %v268 = vadd.f32 %v266, %v267
        %v269 = vrot.slane %v268, 2
        %v270 = vadd.f32 %v268, %v269
        %v271 = vrot.slane %v270, 1
        %v272 = vadd.f32 %v270, %v271
        %v273 = vadd.f32 %v264, %v272
        %vm274 = vcmask 253952
        %275 = vst.msk [vmem:[%s229] sm:$0x1] %vm274, %v273
        // Predicated region
        $region37: #{tpu_custom_call.1} parent=31 // pred_check
          %p276 = pneg %p250
        $region38: #{tpu_custom_call.1} parent=31 // pred_check_branch
          %278 = sbr.rel (%p276) target = $region40
        $region39: #{tpu_custom_call.1} parent=31 // pred_region
          %v279 = vld [vmem:[%s229] sm:$0x1]
          %v280 = vld [vmem:[%s249] sm:$0x1]
          %282 = vset.pattern.permute.xlu0 0
          %283 = vperm.xlu0 %282, %v280
          %v284 = vpop.permute.xlu0 %283
          %v286 = vlaneseq
          %v287 = vshrl.u32 %v286, 7
          %v288 = vsub.s32 0, %v287
          %v289 = vrot.slane %v284, %v288
          %v290 = vrcp.pop %v289
          %v291 = vmul.f32 %v279, %v290
          %292 = vst.msk [vmem:[%s229] sm:$0x1] %vm274, %v291
        $region40: #{tpu_custom_call.1} parent=31 // pred_fallthru
          _
        %s293 = sand.u32 %s130, 1
        %s294 = scalar_lea.sflag [#allocation3], %s293
        %s295 = sand.u32 %s130, 1
        %s296 = scalar_lea.vmem [#allocation2], %s295
        // Predicated region
        $region41: #{tpu_custom_call.1} parent=31 // pred_check
          %p297 = pneg %p140
        $region42: #{tpu_custom_call.1} parent=31 // pred_check_branch
          %299 = sbr.rel (%p297) target = $region44
        $region43: #{tpu_custom_call.1} parent=31 // pred_region
          %s301 = ssub.s32 16, 16
          %302 = vsyncadd %s294, %s301
          %s303 = sadd.s32 %s23, %s22
          %s304 = smul.addr %s303, 16
          %s305 = scalar_lea.hbm %s3, %s304
          %s307 = sshll.u32 %s296, 4
          %s308 = int_to_ptr.vmem [resolvable:$true] %s307
          %310 = dma.vmem_to_hbm [thread:$0]  %s308, 16, %s305, %s294
        $region44: #{tpu_custom_call.1} parent=31 // pred_fallthru
          _
      $region32: #{tpu_custom_call.1} parent=5 // pred_fallthru
        _
      %p311 = scmp.le.s32.totalorder 2, %s12
      // Predicated region
      $region45: #{tpu_custom_call.1} parent=5 // pred_check
        %p312 = pneg %p311
      $region46: #{tpu_custom_call.1} parent=5 // pred_check_branch
        %314 = sbr.rel (%p312) target = $region48
      $region47: #{tpu_custom_call.1} parent=5 // pred_region
        %s315 = ssub.s32 %s12, 2
        // Predicated region
        $region49: #{tpu_custom_call.1} parent=47 // pred_check
          %p316 = pneg %p146
        $region50: #{tpu_custom_call.1} parent=47 // pred_check_branch
          %318 = sbr.rel (%p316) target = $region52
        $region51: #{tpu_custom_call.1} parent=47 // pred_region
          %s319 = sand.u32 %s131, 1
          %s320 = scalar_lea.sflag [#allocation3], %s319
          %s321 = sand.u32 %s131, 1
          %s322 = scalar_lea.vmem [#allocation2], %s321
          %323 = dma.done %s320, 16
        $region52: #{tpu_custom_call.1} parent=47 // pred_fallthru
          _
      $region48: #{tpu_custom_call.1} parent=5 // pred_fallthru
        _
    $region6: #{tpu_custom_call.1} parent=1 // loop_footer
      %s16 = sadd.s32 1, %s12
    $region7: #{tpu_custom_call.1} parent=1 // loop_footer_branch
      %11 = sbr.rel target = $region3
    $region8: #{tpu_custom_call.1} parent=1 // loop_exit
      _
    %324 = vsyncpa [#allocation3], 1
    %s325 = scalar_lea.sflag [#allocation3], 1
    %326 = vsyncpa %s325, 1

</llo_original>
